<compile_context>
chip_gen: v7x
topology: tpu7x:2x2x1
jax: 0.10.0
libtpu: 0.0.40
codegen_flags: <defaults>
</compile_context>

<pallas_src>
import jax
import jax.numpy as jnp
from jax.experimental import pallas as pl
from jax.experimental.pallas import tpu as pltpu
from jax.scipy.linalg import block_diag

# ----------------------------- configuration --------------------------------
B, FEAT_DIM, H, W = 2, 32, 8, 8      # DINO feature map (b, feat_dim, h, w)
HIDDEN = 16                          # cfg['vq']['embed_dims'][0]
NUM_PQ = 2                           # cfg['vq']['num_pq']
K = 16                               # cfg['vq']['num_codebooks'][0]
DQ = HIDDEN // NUM_PQ                # per-PQ latent dim
BETA = 0.25                          # cfg['vq']['beta']
MOMENTUM = 0.99                      # cfg['encoder']['momentum']
N = B * H * W                        # tokens (bhw) = 128 -> one full lane tile
PK = NUM_PQ * K                      # stacked codebook rows (32)


# ------------------------------- fused kernel --------------------------------
def _fused_kernel(x1_ref, x2_ref, hw_ref, hb_ref, ew_ref, eb_ref,
                  wdist_ref, cbn_ref, wrec_ref, wcls_ref, cbias_ref,
                  z1_ref, zq_ref, loss_ref):
    """Fused heads -> L2-normalize -> product VQ -> grouped-cls CE -> MSE.

    x1/x2:  (FEAT_DIM, N)   dino_feat / dino_feat_aug, token-on-lanes
    hw/ew:  (HIDDEN, FEAT_DIM)  trainable / EMA head weight ; hb/eb: (HIDDEN, 1)
    wdist:  (PK, HIDDEN)    block-diag of -2*codebook_p
    cbn:    (PK, 1)         ||codebook row||^2
    wrec:   (HIDDEN, PK)    block-diag of codebook_p^T  (one-hot -> z_q)
    wcls:   (PK, HIDDEN)    block-diag grouped classifier weight ; cbias: (PK, 1)
    z1:     (HIDDEN, N)     trainable-head projection of dino_feat
    zq:     (HIDDEN, N)     quantized EMA projection of dino_feat_aug
    loss:   (3,) SMEM       [vq-loss, mse-loss, cls-loss]
    """
    f32 = jnp.float32

    # EMA momentum update happens before the EMA head is applied (as in PyTorch).
    ema_w = MOMENTUM * ew_ref[...] + (1.0 - MOMENTUM) * hw_ref[...]
    ema_b = MOMENTUM * eb_ref[...] + (1.0 - MOMENTUM) * hb_ref[...]

    # heads: (HIDDEN, FEAT) @ (FEAT, N)
    z1 = jnp.dot(hw_ref[...], x1_ref[...], preferred_element_type=f32) + hb_ref[...]
    z2 = jnp.dot(ema_w, x2_ref[...], preferred_element_type=f32) + ema_b
    z1_ref[...] = z1

    # F.normalize(dim=-1): per-token L2 norm over the channel (sublane) axis.
    n1 = z1 * jax.lax.rsqrt(jnp.maximum(jnp.sum(z1 * z1, axis=0, keepdims=True), 1e-24))
    n2 = z2 * jax.lax.rsqrt(jnp.maximum(jnp.sum(z2 * z2, axis=0, keepdims=True), 1e-24))
    dmse = n1 - n2
    mse_loss = jnp.sum(dmse * dmse) * (1.0 / (N * HIDDEN))

    # ---- product VQ: both groups merged into one block-diagonal matmul -------
    # d[p*K+k, t] = ||cb_pk||^2 - 2 <cb_pk, z2_p[:, t]>   (||z||^2 dropped:
    # argmin over k is invariant to a per-token constant).
    d = jnp.dot(wdist_ref[...], z2, preferred_element_type=f32) + cbn_ref[...]  # (PK, N)
    row = jax.lax.broadcasted_iota(jnp.int32, (PK, N), 0)

    def groupwise_bcast_min(v):
        """Per-PQ-group min over its K sublanes, broadcast back to (PK, N)."""
        acc = None
        for p in range(NUM_PQ):                          # static, unrolled
            mp = jnp.min(v[p * K:(p + 1) * K, :], axis=0, keepdims=True)
            acc = mp if acc is None else jnp.where(row < p * K, acc, mp)
        return acc

    min_b = groupwise_bcast_min(d)
    cand = jnp.where(d <= min_b, row, PK)                # first-index tie break
    onehot = (row == groupwise_bcast_min(cand)).astype(f32)   # (PK, N)

    # z_q = embedding(argmin) for both groups at once: (HIDDEN, PK) @ (PK, N).
    zq = jnp.dot(wrec_ref[...], onehot, preferred_element_type=f32)
    zq_ref[...] = zq
    dv = zq - z2
    # sum_p (1+beta)*mean_p / NUM_PQ  ==  (1+beta) * sum(dv^2) / (N*HIDDEN)
    vq_loss = (1.0 + BETA) * jnp.sum(dv * dv) * (1.0 / (N * HIDDEN))

    # ---- grouped 1x1-conv classifier on z1 + CE against VQ pseudo labels -----
    logits = jnp.dot(wcls_ref[...], z1, preferred_element_type=f32) + cbias_ref[...]  # (PK, N)
    lse_sum = f32(0.0)
    for p in range(NUM_PQ):                              # static, unrolled
        lg = logits[p * K:(p + 1) * K, :]
        m = jnp.max(lg, axis=0, keepdims=True)
        lse_sum = lse_sum + jnp.sum(
            jnp.log(jnp.sum(jnp.exp(lg - m), axis=0, keepdims=True)) + m)
    picked = jnp.sum(onehot * logits)                    # reuse VQ one-hot as label mask
    cls_loss = (lse_sum - picked) * (1.0 / (N * NUM_PQ))

    loss_ref[0] = vq_loss
    loss_ref[1] = mse_loss
    loss_ref[2] = cls_loss


# --------------------------- pallas_call wrapper ------------------------------
def _vmem():
    return pl.BlockSpec(memory_space=pltpu.MemorySpace.VMEM)


def fused_forward(x1, x2, head_w, head_b, ema_w, ema_b,
                  w_dist, cb_norm, w_rec, w_cls, cls_b):
    return pl.pallas_call(
        _fused_kernel,
        in_specs=[_vmem() for _ in range(11)],
        out_specs=(_vmem(), _vmem(),
                   pl.BlockSpec(memory_space=pltpu.MemorySpace.SMEM)),
        out_shape=(jax.ShapeDtypeStruct((HIDDEN, N), jnp.float32),
                   jax.ShapeDtypeStruct((HIDDEN, N), jnp.float32),
                   jax.ShapeDtypeStruct((3,), jnp.float32)),
    )(x1, x2, head_w, head_b, ema_w, ema_b, w_dist, cb_norm, w_rec, w_cls, cls_b)


# --------------------------------- glue ---------------------------------------
def to_cn(x):
    """(b, c, h, w) -> (c, b*h*w); token order == torch permute(0,2,3,1).view(-1,c)."""
    b, c, h, w = x.shape
    return jnp.transpose(x, (1, 0, 2, 3)).reshape(c, b * h * w)


def from_cn(x_cn, b, h, w):
    """(c, b*h*w) -> (b, c, h, w)."""
    c = x_cn.shape[0]
    return jnp.transpose(x_cn.reshape(c, b, h, w), (1, 0, 2, 3))


def dino_pqgo_cls_forward(params, dino_feat, dino_feat_aug):
    """Eval-mode forward of DINOPQGOCLS starting from DINO features."""
    b, _, h, w = dino_feat.shape

    cb = params['codebooks']                              # (NUM_PQ, K, DQ)
    cw = params['cls_w']                                  # (NUM_PQ, K, DQ)
    # per-forward constants, hoisted out of the kernel (block-diagonal merge):
    w_dist = block_diag(*[-2.0 * cb[p] for p in range(NUM_PQ)])      # (PK, HIDDEN)
    cb_norm = jnp.sum(cb * cb, axis=2).reshape(PK, 1)                # ||cb_k||^2
    w_rec = block_diag(*[cb[p].T for p in range(NUM_PQ)])            # (HIDDEN, PK)
    w_cls = block_diag(*[cw[p] for p in range(NUM_PQ)])              # (PK, HIDDEN)
    cls_b = params['cls_b'].reshape(PK, 1)

    z1_cn, zq_cn, losses = fused_forward(
        to_cn(dino_feat), to_cn(dino_feat_aug),
        params['head_w'], params['head_b'][:, None],
        params['ema_w'], params['ema_b'][:, None],
        w_dist, cb_norm, w_rec, w_cls, cls_b)

    quantized_feat = from_cn(zq_cn, b, h, w)                  # (b, HIDDEN, h, w)

    # reproduce `out = self._reshape(z1_1)` exactly: torch .view(-1,h,w,d) on the
    # NCHW-contiguous z1_1 followed by permute(0,3,1,2) (note: scrambles layout).
    z1_nchw = from_cn(z1_cn, b, h, w)
    out = jnp.transpose(z1_nchw.reshape(b, h, w, HIDDEN), (0, 3, 1, 2))

    outputs = {'vq-loss': losses[0], 'mse-loss': losses[1], 'cls-loss': losses[2]}
    return out, quantized_feat, outputs


def init_params(key):
    ks = jax.random.split(key, 4)
    head_w = jax.random.normal(ks[0], (HIDDEN, FEAT_DIM), jnp.float32) * 0.1
    head_b = jnp.zeros((HIDDEN,), jnp.float32)
    # Codebook init: uniform(-1/K, 1/K), one codebook per PQ group
    codebooks = jax.random.uniform(ks[1], (NUM_PQ, K, DQ), jnp.float32,
                                   minval=-1.0 / K, maxval=1.0 / K)
    # classifier: Conv1d(HIDDEN, K*NUM_PQ, groups=NUM_PQ, kernel_size=1)
    cls_w = jax.random.normal(ks[2], (NUM_PQ, K, DQ), jnp.float32) * 0.1
    cls_b = jax.random.normal(ks[3], (NUM_PQ, K), jnp.float32) * 0.01
    return dict(head_w=head_w, head_b=head_b,
                ema_w=head_w, ema_b=head_b,          # EMA head copied at init
                codebooks=codebooks, cls_w=cls_w, cls_b=cls_b)


if __name__ == "__main__":
    key = jax.random.PRNGKey(0)
    k_feat, k_aug, k_param = jax.random.split(key, 3)
    params = init_params(k_param)

    dino_feat = jax.random.normal(k_feat, (B, FEAT_DIM, H, W), jnp.float32)
    dino_feat_aug = jax.random.normal(k_aug, (B, FEAT_DIM, H, W), jnp.float32)

    fwd = jax.jit(dino_pqgo_cls_forward)
    out, quantized_feat, outputs = fwd(params, dino_feat, dino_feat_aug)
    jax.block_until_ready((out, quantized_feat, outputs))

    assert out.shape == (B, HIDDEN, H, W)
    assert quantized_feat.shape == (B, HIDDEN, H, W)
    assert all(bool(jnp.isfinite(v)) for v in outputs.values())
    print("KERNEL_OK")
</pallas_src>

<mosaic_0001>
module attributes {stable_mosaic.version = 11 : i64} {
  func.func @_fused_kernel(%arg0: memref<32x128xf32, #tpu.memory_space<vmem>>, %arg1: memref<32x128xf32, #tpu.memory_space<vmem>>, %arg2: memref<16x32xf32, #tpu.memory_space<vmem>>, %arg3: memref<16x1xf32, #tpu.memory_space<vmem>>, %arg4: memref<16x32xf32, #tpu.memory_space<vmem>>, %arg5: memref<16x1xf32, #tpu.memory_space<vmem>>, %arg6: memref<32x16xf32, #tpu.memory_space<vmem>>, %arg7: memref<32x1xf32, #tpu.memory_space<vmem>>, %arg8: memref<16x32xf32, #tpu.memory_space<vmem>>, %arg9: memref<32x16xf32, #tpu.memory_space<vmem>>, %arg10: memref<32x1xf32, #tpu.memory_space<vmem>>, %arg11: memref<16x128xf32, #tpu.memory_space<vmem>>, %arg12: memref<16x128xf32, #tpu.memory_space<vmem>>, %arg13: memref<3xf32, #tpu.memory_space<smem>>) attributes {dimension_semantics = [], scalar_prefetch = 0 : i64, scratch_operands = 0 : i64, tpu.core_type = #tpu.core_type<tc>} {
    %c0 = arith.constant 0 : index
    %c0_0 = arith.constant 0 : index
    %0 = vector.load %arg4[%c0, %c0_0] : memref<16x32xf32, #tpu.memory_space<vmem>>, vector<16x32xf32>
    %cst = arith.constant 9.900000e-01 : f32
    %1 = vector.broadcast %cst : f32 to vector<16x32xf32>
    %2 = arith.mulf %1, %0 : vector<16x32xf32>
    %c0_1 = arith.constant 0 : index
    %c0_2 = arith.constant 0 : index
    %3 = vector.load %arg2[%c0_1, %c0_2] : memref<16x32xf32, #tpu.memory_space<vmem>>, vector<16x32xf32>
    %cst_3 = arith.constant 0.00999999977 : f32
    %4 = vector.broadcast %cst_3 : f32 to vector<16x32xf32>
    %5 = arith.mulf %4, %3 : vector<16x32xf32>
    %6 = arith.addf %2, %5 : vector<16x32xf32>
    %c0_4 = arith.constant 0 : index
    %c0_5 = arith.constant 0 : index
    %7 = vector.load %arg5[%c0_4, %c0_5] : memref<16x1xf32, #tpu.memory_space<vmem>>, vector<16x1xf32>
    %cst_6 = arith.constant 9.900000e-01 : f32
    %8 = vector.broadcast %cst_6 : f32 to vector<16x1xf32>
    %9 = arith.mulf %8, %7 : vector<16x1xf32>
    %c0_7 = arith.constant 0 : index
    %c0_8 = arith.constant 0 : index
    %10 = vector.load %arg3[%c0_7, %c0_8] : memref<16x1xf32, #tpu.memory_space<vmem>>, vector<16x1xf32>
    %cst_9 = arith.constant 0.00999999977 : f32
    %11 = vector.broadcast %cst_9 : f32 to vector<16x1xf32>
    %12 = arith.mulf %11, %10 : vector<16x1xf32>
    %13 = arith.addf %9, %12 : vector<16x1xf32>
    %c0_10 = arith.constant 0 : index
    %c0_11 = arith.constant 0 : index
    %14 = vector.load %arg2[%c0_10, %c0_11] : memref<16x32xf32, #tpu.memory_space<vmem>>, vector<16x32xf32>
    %c0_12 = arith.constant 0 : index
    %c0_13 = arith.constant 0 : index
    %15 = vector.load %arg0[%c0_12, %c0_13] : memref<32x128xf32, #tpu.memory_space<vmem>>, vector<32x128xf32>
    %cst_14 = arith.constant dense<0.000000e+00> : vector<16x128xf32>
    %16 = tpu.matmul %14, %15, %cst_14 {dimension_numbers = #tpu.dot_dimension_numbers<[1], [0], [0], [1], [0, 0, 1, 1], [], []>} : vector<16x32xf32>, vector<32x128xf32>, vector<16x128xf32> -> vector<16x128xf32>
    %c0_15 = arith.constant 0 : index
    %c0_16 = arith.constant 0 : index
    %17 = vector.load %arg3[%c0_15, %c0_16] : memref<16x1xf32, #tpu.memory_space<vmem>>, vector<16x1xf32>
    %18 = vector.broadcast %17 : vector<16x1xf32> to vector<16x128xf32>
    %19 = arith.addf %16, %18 : vector<16x128xf32>
    %c0_17 = arith.constant 0 : index
    %c0_18 = arith.constant 0 : index
    %20 = vector.load %arg1[%c0_17, %c0_18] : memref<32x128xf32, #tpu.memory_space<vmem>>, vector<32x128xf32>
    %cst_19 = arith.constant dense<0.000000e+00> : vector<16x128xf32>
    %21 = tpu.matmul %6, %20, %cst_19 {dimension_numbers = #tpu.dot_dimension_numbers<[1], [0], [0], [1], [0, 0, 1, 1], [], []>} : vector<16x32xf32>, vector<32x128xf32>, vector<16x128xf32> -> vector<16x128xf32>
    %22 = vector.broadcast %13 : vector<16x1xf32> to vector<16x128xf32>
    %23 = arith.addf %21, %22 : vector<16x128xf32>
    %c0_20 = arith.constant 0 : index
    %c0_21 = arith.constant 0 : index
    %24 = vector.load %arg11[%c0_20, %c0_21] : memref<16x128xf32, #tpu.memory_space<vmem>>, vector<16x128xf32>
    tpu.vector_store %arg11[%c0_20, %c0_21], %19 {strides = array<i32>} : memref<16x128xf32, #tpu.memory_space<vmem>>, vector<16x128xf32>,
    %25 = arith.mulf %19, %19 : vector<16x128xf32>
    %cst_22 = arith.constant dense<0.000000e+00> : vector<128xf32>
    %26 = vector.multi_reduction <add>, %25, %cst_22 [0] : vector<16x128xf32> to vector<128xf32>
    %27 = vector.shape_cast %26 : vector<128xf32> to vector<1x128xf32>
    %cst_23 = arith.constant 1.000000e-24 : f32
    %28 = vector.broadcast %cst_23 : f32 to vector<1x128xf32>
    %29 = arith.maximumf %27, %28 : vector<1x128xf32>
    %30 = math.rsqrt %29 : vector<1x128xf32>
    %31 = vector.broadcast %30 : vector<1x128xf32> to vector<16x128xf32>
    %32 = arith.mulf %19, %31 : vector<16x128xf32>
    %33 = arith.mulf %23, %23 : vector<16x128xf32>
    %cst_24 = arith.constant dense<0.000000e+00> : vector<128xf32>
    %34 = vector.multi_reduction <add>, %33, %cst_24 [0] : vector<16x128xf32> to vector<128xf32>
    %35 = vector.shape_cast %34 : vector<128xf32> to vector<1x128xf32>
    %cst_25 = arith.constant 1.000000e-24 : f32
    %36 = vector.broadcast %cst_25 : f32 to vector<1x128xf32>
    %37 = arith.maximumf %35, %36 : vector<1x128xf32>
    %38 = math.rsqrt %37 : vector<1x128xf32>
    %39 = vector.broadcast %38 : vector<1x128xf32> to vector<16x128xf32>
    %40 = arith.mulf %23, %39 : vector<16x128xf32>
    %41 = arith.subf %32, %40 : vector<16x128xf32>
    %42 = arith.mulf %41, %41 : vector<16x128xf32>
    %43 = vector.shape_cast %42 : vector<16x128xf32> to vector<1x16x128xf32>
    %cst_26 = arith.constant dense<0.000000e+00> : vector<1xf32>
    %44 = vector.multi_reduction <add>, %43, %cst_26 [1, 2] : vector<1x16x128xf32> to vector<1xf32>
    %45 = vector.shape_cast %44 : vector<1xf32> to vector<1x1x1xf32>
    %46 = vector.extract %45[0, 0, 0] : f32 from vector<1x1x1xf32>
    %cst_27 = arith.constant 4.8828125E-4 : f32
    %47 = arith.mulf %46, %cst_27 : f32
    %c0_28 = arith.constant 0 : index
    %c0_29 = arith.constant 0 : index
    %48 = vector.load %arg6[%c0_28, %c0_29] : memref<32x16xf32, #tpu.memory_space<vmem>>, vector<32x16xf32>
    %cst_30 = arith.constant dense<0.000000e+00> : vector<32x128xf32>
    %49 = tpu.matmul %48, %23, %cst_30 {dimension_numbers = #tpu.dot_dimension_numbers<[1], [0], [0], [1], [0, 0, 1, 1], [], []>} : vector<32x16xf32>, vector<16x128xf32>, vector<32x128xf32> -> vector<32x128xf32>
    %c0_31 = arith.constant 0 : index
    %c0_32 = arith.constant 0 : index
    %50 = vector.load %arg7[%c0_31, %c0_32] : memref<32x1xf32, #tpu.memory_space<vmem>>, vector<32x1xf32>
    %51 = vector.broadcast %50 : vector<32x1xf32> to vector<32x128xf32>
    %52 = arith.addf %49, %51 : vector<32x128xf32>
    %53 = tpu.iota {dimensions = array<i32: 0>} : vector<32x128xi32>
    %54 = vector.extract_strided_slice %52 {offsets = [0, 0], sizes = [16, 128], strides = [1, 1]} : vector<32x128xf32> to vector<16x128xf32>
    %cst_33 = arith.constant dense<0x7F800000> : vector<128xf32>
    %55 = vector.multi_reduction <minimumf>, %54, %cst_33 [0] : vector<16x128xf32> to vector<128xf32>
    %56 = vector.shape_cast %55 : vector<128xf32> to vector<1x128xf32>
    %57 = vector.extract_strided_slice %52 {offsets = [16, 0], sizes = [16, 128], strides = [1, 1]} : vector<32x128xf32> to vector<16x128xf32>
    %cst_34 = arith.constant dense<0x7F800000> : vector<128xf32>
    %58 = vector.multi_reduction <minimumf>, %57, %cst_34 [0] : vector<16x128xf32> to vector<128xf32>
    %59 = vector.shape_cast %58 : vector<128xf32> to vector<1x128xf32>
    %c16_i32 = arith.constant 16 : i32
    %60 = vector.broadcast %c16_i32 : i32 to vector<32x128xi32>
    %61 = arith.cmpi slt, %53, %60 : vector<32x128xi32>
    %62 = vector.shape_cast %56 : vector<1x128xf32> to vector<1x128xf32>
    %63 = vector.broadcast %62 : vector<1x128xf32> to vector<32x128xf32>
    %64 = vector.shape_cast %59 : vector<1x128xf32> to vector<1x128xf32>
    %65 = vector.broadcast %64 : vector<1x128xf32> to vector<32x128xf32>
    %66 = arith.select %61, %63, %65 : vector<32x128xi1>, vector<32x128xf32>
    %67 = arith.cmpf ole, %52, %66 : vector<32x128xf32>
    %c32_i32 = arith.constant 32 : i32
    %68 = vector.broadcast %c32_i32 : i32 to vector<32x128xi32>
    %69 = arith.select %67, %53, %68 : vector<32x128xi1>, vector<32x128xi32>
    %70 = vector.extract_strided_slice %69 {offsets = [0, 0], sizes = [16, 128], strides = [1, 1]} : vector<32x128xi32> to vector<16x128xi32>
    %cst_35 = arith.constant dense<2147483647> : vector<128xi32>
    %71 = vector.multi_reduction <minsi>, %70, %cst_35 [0] : vector<16x128xi32> to vector<128xi32>
    %72 = vector.shape_cast %71 : vector<128xi32> to vector<1x128xi32>
    %73 = vector.extract_strided_slice %69 {offsets = [16, 0], sizes = [16, 128], strides = [1, 1]} : vector<32x128xi32> to vector<16x128xi32>
    %cst_36 = arith.constant dense<2147483647> : vector<128xi32>
    %74 = vector.multi_reduction <minsi>, %73, %cst_36 [0] : vector<16x128xi32> to vector<128xi32>
    %75 = vector.shape_cast %74 : vector<128xi32> to vector<1x128xi32>
    %c16_i32_37 = arith.constant 16 : i32
    %76 = vector.broadcast %c16_i32_37 : i32 to vector<32x128xi32>
    %77 = arith.cmpi slt, %53, %76 : vector<32x128xi32>
    %78 = vector.shape_cast %72 : vector<1x128xi32> to vector<1x128xi32>
    %79 = vector.broadcast %78 : vector<1x128xi32> to vector<32x128xi32>
    %80 = vector.shape_cast %75 : vector<1x128xi32> to vector<1x128xi32>
    %81 = vector.broadcast %80 : vector<1x128xi32> to vector<32x128xi32>
    %82 = arith.select %77, %79, %81 : vector<32x128xi1>, vector<32x128xi32>
    %83 = arith.cmpi eq, %53, %82 : vector<32x128xi32>
    %84 = arith.extui %83 : vector<32x128xi1> to vector<32x128xi32>
    %85 = arith.sitofp %84 : vector<32x128xi32> to vector<32x128xf32>
    %c0_38 = arith.constant 0 : index
    %c0_39 = arith.constant 0 : index
    %86 = vector.load %arg8[%c0_38, %c0_39] : memref<16x32xf32, #tpu.memory_space<vmem>>, vector<16x32xf32>
    %cst_40 = arith.constant dense<0.000000e+00> : vector<16x128xf32>
    %87 = tpu.matmul %86, %85, %cst_40 {dimension_numbers = #tpu.dot_dimension_numbers<[1], [0], [0], [1], [0, 0, 1, 1], [], []>} : vector<16x32xf32>, vector<32x128xf32>, vector<16x128xf32> -> vector<16x128xf32>
    %c0_41 = arith.constant 0 : index
    %c0_42 = arith.constant 0 : index
    %88 = vector.load %arg12[%c0_41, %c0_42] : memref<16x128xf32, #tpu.memory_space<vmem>>, vector<16x128xf32>
    tpu.vector_store %arg12[%c0_41, %c0_42], %87 {strides = array<i32>} : memref<16x128xf32, #tpu.memory_space<vmem>>, vector<16x128xf32>,
    %89 = arith.subf %87, %23 : vector<16x128xf32>
    %90 = arith.mulf %89, %89 : vector<16x128xf32>
    %91 = vector.shape_cast %90 : vector<16x128xf32> to vector<1x16x128xf32>
    %cst_43 = arith.constant dense<0.000000e+00> : vector<1xf32>
    %92 = vector.multi_reduction <add>, %91, %cst_43 [1, 2] : vector<1x16x128xf32> to vector<1xf32>
    %93 = vector.shape_cast %92 : vector<1xf32> to vector<1x1x1xf32>
    %94 = vector.extract %93[0, 0, 0] : f32 from vector<1x1x1xf32>
    %cst_44 = arith.constant 1.250000e+00 : f32
    %95 = arith.mulf %cst_44, %94 : f32
    %cst_45 = arith.constant 4.8828125E-4 : f32
    %96 = arith.mulf %95, %cst_45 : f32
    %c0_46 = arith.constant 0 : index
    %c0_47 = arith.constant 0 : index
    %97 = vector.load %arg9[%c0_46, %c0_47] : memref<32x16xf32, #tpu.memory_space<vmem>>, vector<32x16xf32>
    %cst_48 = arith.constant dense<0.000000e+00> : vector<32x128xf32>
    %98 = tpu.matmul %97, %19, %cst_48 {dimension_numbers = #tpu.dot_dimension_numbers<[1], [0], [0], [1], [0, 0, 1, 1], [], []>} : vector<32x16xf32>, vector<16x128xf32>, vector<32x128xf32> -> vector<32x128xf32>
    %c0_49 = arith.constant 0 : index
    %c0_50 = arith.constant 0 : index
    %99 = vector.load %arg10[%c0_49, %c0_50] : memref<32x1xf32, #tpu.memory_space<vmem>>, vector<32x1xf32>
    %100 = vector.broadcast %99 : vector<32x1xf32> to vector<32x128xf32>
    %101 = arith.addf %98, %100 : vector<32x128xf32>
    %102 = vector.extract_strided_slice %101 {offsets = [0, 0], sizes = [16, 128], strides = [1, 1]} : vector<32x128xf32> to vector<16x128xf32>
    %cst_51 = arith.constant dense<0xFF800000> : vector<128xf32>
    %103 = vector.multi_reduction <maximumf>, %102, %cst_51 [0] : vector<16x128xf32> to vector<128xf32>
    %104 = vector.shape_cast %103 : vector<128xf32> to vector<1x128xf32>
    %105 = vector.broadcast %104 : vector<1x128xf32> to vector<16x128xf32>
    %106 = arith.subf %102, %105 : vector<16x128xf32>
    %107 = math.exp %106 : vector<16x128xf32>
    %cst_52 = arith.constant dense<0.000000e+00> : vector<128xf32>
    %108 = vector.multi_reduction <add>, %107, %cst_52 [0] : vector<16x128xf32> to vector<128xf32>
    %109 = vector.shape_cast %108 : vector<128xf32> to vector<1x128xf32>
    %110 = math.log %109 : vector<1x128xf32>
    %111 = arith.addf %110, %104 : vector<1x128xf32>
    %112 = vector.shape_cast %111 : vector<1x128xf32> to vector<1x1x128xf32>
    %cst_53 = arith.constant dense<0.000000e+00> : vector<1xf32>
    %113 = vector.multi_reduction <add>, %112, %cst_53 [1, 2] : vector<1x1x128xf32> to vector<1xf32>
    %114 = vector.shape_cast %113 : vector<1xf32> to vector<1x1x1xf32>
    %115 = vector.extract %114[0, 0, 0] : f32 from vector<1x1x1xf32>
    %cst_54 = arith.constant 0.000000e+00 : f32
    %116 = arith.addf %cst_54, %115 : f32
    %117 = vector.extract_strided_slice %101 {offsets = [16, 0], sizes = [16, 128], strides = [1, 1]} : vector<32x128xf32> to vector<16x128xf32>
    %cst_55 = arith.constant dense<0xFF800000> : vector<128xf32>
    %118 = vector.multi_reduction <maximumf>, %117, %cst_55 [0] : vector<16x128xf32> to vector<128xf32>
    %119 = vector.shape_cast %118 : vector<128xf32> to vector<1x128xf32>
    %120 = vector.broadcast %119 : vector<1x128xf32> to vector<16x128xf32>
    %121 = arith.subf %117, %120 : vector<16x128xf32>
    %122 = math.exp %121 : vector<16x128xf32>
    %cst_56 = arith.constant dense<0.000000e+00> : vector<128xf32>
    %123 = vector.multi_reduction <add>, %122, %cst_56 [0] : vector<16x128xf32> to vector<128xf32>
    %124 = vector.shape_cast %123 : vector<128xf32> to vector<1x128xf32>
    %125 = math.log %124 : vector<1x128xf32>
    %126 = arith.addf %125, %119 : vector<1x128xf32>
    %127 = vector.shape_cast %126 : vector<1x128xf32> to vector<1x1x128xf32>
    %cst_57 = arith.constant dense<0.000000e+00> : vector<1xf32>
    %128 = vector.multi_reduction <add>, %127, %cst_57 [1, 2] : vector<1x1x128xf32> to vector<1xf32>
    %129 = vector.shape_cast %128 : vector<1xf32> to vector<1x1x1xf32>
    %130 = vector.extract %129[0, 0, 0] : f32 from vector<1x1x1xf32>
    %131 = arith.addf %116, %130 : f32
    %132 = arith.mulf %85, %101 : vector<32x128xf32>
    %133 = vector.shape_cast %132 : vector<32x128xf32> to vector<1x32x128xf32>
    %cst_58 = arith.constant dense<0.000000e+00> : vector<1xf32>
    %134 = vector.multi_reduction <add>, %133, %cst_58 [1, 2] : vector<1x32x128xf32> to vector<1xf32>
    %135 = vector.shape_cast %134 : vector<1xf32> to vector<1x1x1xf32>
    %136 = vector.extract %135[0, 0, 0] : f32 from vector<1x1x1xf32>
    %137 = arith.subf %131, %136 : f32
    %cst_59 = arith.constant 3.906250e-03 : f32
    %138 = arith.mulf %137, %cst_59 : f32
    %c0_60 = arith.constant 0 : index
    %139 = memref.load %arg13[%c0_60] : memref<3xf32, #tpu.memory_space<smem>>
    memref.store %96, %arg13[%c0_60] : memref<3xf32, #tpu.memory_space<smem>>
    %c1 = arith.constant 1 : index
    %140 = memref.load %arg13[%c1] : memref<3xf32, #tpu.memory_space<smem>>
    memref.store %47, %arg13[%c1] : memref<3xf32, #tpu.memory_space<smem>>
    %c2 = arith.constant 2 : index
    %141 = memref.load %arg13[%c2] : memref<3xf32, #tpu.memory_space<smem>>
    memref.store %138, %arg13[%c2] : memref<3xf32, #tpu.memory_space<smem>>
    return
  }
}

</mosaic_0001>

<llo_original>
// kernel: dino_pqgo_cls_forward.1
$region0: #{dino_pqgo_cls_forward.1}
  #allocation0 [shape = 'u32[]', space=smem, size = 0x4, offset = 0x4, fixed_abs, tag = 'smem constant byte address 0x4 - core index']
  #allocation1 [shape = 'u32[144,128]{1,0:T(1,128)}', space=vmem, size = 0x12000, scoped, tag = 'internal scratch']
  %s0 = inlined_call_operand.vmem [shape: f32[32,128], index: 0, kind: input, shape index: {}]
  %s1 = inlined_call_operand.vmem [shape: f32[32,128], index: 1, kind: input, shape index: {}]
  %s2 = inlined_call_operand.vmem [shape: f32[16,32], index: 2, kind: input, shape index: {}]
  %s3 = inlined_call_operand.vmem [shape: f32[16,1], index: 3, kind: input, shape index: {}]
  %s4 = inlined_call_operand.vmem [shape: f32[16,32], index: 4, kind: input, shape index: {}]
  %s5 = inlined_call_operand.vmem [shape: f32[16,1], index: 5, kind: input, shape index: {}]
  %s6 = inlined_call_operand.vmem [shape: f32[32,16], index: 6, kind: input, shape index: {}]
  %s7 = inlined_call_operand.vmem [shape: f32[32,1], index: 7, kind: input, shape index: {}]
  %s8 = inlined_call_operand.vmem [shape: f32[16,32], index: 8, kind: input, shape index: {}]
  %s9 = inlined_call_operand.vmem [shape: f32[32,16], index: 9, kind: input, shape index: {}]
  %s10 = inlined_call_operand.vmem [shape: f32[32,1], index: 10, kind: input, shape index: {}]
  %s11 = inlined_call_operand.vmem [shape: f32[16,128], index: 11, kind: output, shape index: {0}]
  %s12 = inlined_call_operand.vmem [shape: f32[16,128], index: 12, kind: output, shape index: {1}]
  %s13 = inlined_call_operand.vmem [shape: f32[3], index: 13, kind: output, shape index: {2}]
  %14 = xla_tuple %s11, %s12, %s13
  %s15 = sld [smem:[#allocation0]]
  $region70: #{dino_pqgo_cls_forward.1} parent=0
    _
  %s17 = ssub.s32 1, %s15
  %s18 = scalar_select 0, %s17, %s15
  $region1: #{dino_pqgo_cls_forward.1} parent=0
    #allocation2 [shape = 'u8[512]{0}', space=smem, size = 0x200, scoped, tag = 'output window, operand 2, single buffered']
    #allocation3 [shape = 's32[1]{0}', space=sflag, size = 0x4, scoped, tag = 'scoped memory for dino_pqgo_cls_forward.1']
    %19 = vsyncpa [#allocation3], 0
    // Predicated region
    $region2: #{dino_pqgo_cls_forward.1} parent=1 // pred_check
      _
    $region3: #{dino_pqgo_cls_forward.1} parent=1 // pred_check_branch
      %21 = sbr.rel (0) target = $region5
    $region4: #{dino_pqgo_cls_forward.1} parent=1 // pred_region
      _
    $region5: #{dino_pqgo_cls_forward.1} parent=1 // pred_fallthru
      _
    // Predicated region
    $region6: #{dino_pqgo_cls_forward.1} parent=1 // pred_check
      _
    $region7: #{dino_pqgo_cls_forward.1} parent=1 // pred_check_branch
      %23 = sbr.rel (0) target = $region9
    $region8: #{dino_pqgo_cls_forward.1} parent=1 // pred_region
      _
    $region9: #{dino_pqgo_cls_forward.1} parent=1 // pred_fallthru
      _
    // Predicated region
    $region10: #{dino_pqgo_cls_forward.1} parent=1 // pred_check
      _
    $region11: #{dino_pqgo_cls_forward.1} parent=1 // pred_check_branch
      %25 = sbr.rel (0) target = $region13
    $region12: #{dino_pqgo_cls_forward.1} parent=1 // pred_region
      _
    $region13: #{dino_pqgo_cls_forward.1} parent=1 // pred_fallthru
      _
    // Predicated region
    $region14: #{dino_pqgo_cls_forward.1} parent=1 // pred_check
      _
    $region15: #{dino_pqgo_cls_forward.1} parent=1 // pred_check_branch
      %27 = sbr.rel (0) target = $region17
    $region16: #{dino_pqgo_cls_forward.1} parent=1 // pred_region
      _
    $region17: #{dino_pqgo_cls_forward.1} parent=1 // pred_fallthru
      _
    // Predicated region
    $region18: #{dino_pqgo_cls_forward.1} parent=1 // pred_check
      _
    $region19: #{dino_pqgo_cls_forward.1} parent=1 // pred_check_branch
      %29 = sbr.rel (0) target = $region21
    $region20: #{dino_pqgo_cls_forward.1} parent=1 // pred_region
      _
    $region21: #{dino_pqgo_cls_forward.1} parent=1 // pred_fallthru
      _
    // Predicated region
    $region22: #{dino_pqgo_cls_forward.1} parent=1 // pred_check
      _
    $region23: #{dino_pqgo_cls_forward.1} parent=1 // pred_check_branch
      %31 = sbr.rel (0) target = $region25
    $region24: #{dino_pqgo_cls_forward.1} parent=1 // pred_region
      _
    $region25: #{dino_pqgo_cls_forward.1} parent=1 // pred_fallthru
      _
    // Predicated region
    $region26: #{dino_pqgo_cls_forward.1} parent=1 // pred_check
      _
    $region27: #{dino_pqgo_cls_forward.1} parent=1 // pred_check_branch
      %33 = sbr.rel (0) target = $region29
    $region28: #{dino_pqgo_cls_forward.1} parent=1 // pred_region
      _
    $region29: #{dino_pqgo_cls_forward.1} parent=1 // pred_fallthru
      _
    // Predicated region
    $region30: #{dino_pqgo_cls_forward.1} parent=1 // pred_check
      _
    $region31: #{dino_pqgo_cls_forward.1} parent=1 // pred_check_branch
      %35 = sbr.rel (0) target = $region33
    $region32: #{dino_pqgo_cls_forward.1} parent=1 // pred_region
      _
    $region33: #{dino_pqgo_cls_forward.1} parent=1 // pred_fallthru
      _
    // Predicated region
    $region34: #{dino_pqgo_cls_forward.1} parent=1 // pred_check
      _
    $region35: #{dino_pqgo_cls_forward.1} parent=1 // pred_check_branch
      %37 = sbr.rel (0) target = $region37
    $region36: #{dino_pqgo_cls_forward.1} parent=1 // pred_region
      _
    $region37: #{dino_pqgo_cls_forward.1} parent=1 // pred_fallthru
      _
    // Predicated region
    $region38: #{dino_pqgo_cls_forward.1} parent=1 // pred_check
      _
    $region39: #{dino_pqgo_cls_forward.1} parent=1 // pred_check_branch
      %39 = sbr.rel (0) target = $region41
    $region40: #{dino_pqgo_cls_forward.1} parent=1 // pred_region
      _
    $region41: #{dino_pqgo_cls_forward.1} parent=1 // pred_fallthru
      _
    // Predicated region
    $region42: #{dino_pqgo_cls_forward.1} parent=1 // pred_check
      _
    $region43: #{dino_pqgo_cls_forward.1} parent=1 // pred_check_branch
      %41 = sbr.rel (0) target = $region45
    $region44: #{dino_pqgo_cls_forward.1} parent=1 // pred_region
      _
    $region45: #{dino_pqgo_cls_forward.1} parent=1 // pred_fallthru
      _
    %v42 = vld [vmem:[%s4] sm:$0xff]
    %v43 = vld [vmem:[%s4 + $0x8] sm:$0xff]
    %v44 = vmul.f32 %v42, 0.99
    %v45 = vmul.f32 %v43, 0.99
    %v46 = vld [vmem:[%s2] sm:$0xff]
    %v47 = vld [vmem:[%s2 + $0x8] sm:$0xff]
    %v48 = vmul.f32 %v46, 0.01
    %v49 = vmul.f32 %v47, 0.01
    %v50 = vadd.f32 %v44, %v48
    %v51 = vadd.f32 %v45, %v49
    %v52 = vld [vmem:[%s5] sm:$0xff]
    %v53 = vld [vmem:[%s5 + $0x8] sm:$0xff]
    %v54 = vmul.f32 %v52, 0.99
    %v55 = vmul.f32 %v53, 0.99
    %v56 = vld [vmem:[%s3] sm:$0xff]
    %v57 = vld [vmem:[%s3 + $0x8] sm:$0xff]
    %v58 = vmul.f32 %v56, 0.01
    %v59 = vmul.f32 %v57, 0.01
    %v60 = vadd.f32 %v54, %v58
    %v61 = vadd.f32 %v55, %v59
    %v62 = vld [vmem:[%s0] sm:$0xff]
    %v63 = vld [vmem:[%s0 + $0x8] sm:$0xff]
    %v64 = vld [vmem:[%s0 + $0x10] sm:$0xff]
    %v65 = vld [vmem:[%s0 + $0x18] sm:$0xff]
    %67 = vset.pattern.permute.xlu0 0
    %68 = vperm.xlu0 %67, %v56
    %v69 = vpop.permute.xlu0 %68
    %72 = vset.pattern.permute.xlu0 0
    %73 = vperm.xlu0 %72, %v57
    %v74 = vpop.permute.xlu0 %73
    %vm76 = vcmask 261120
    %v78 = vsel %vm76, %v46, 0
    %v81 = vsel %vm76, %v47, 0
    %83 = vmatprep.subr.mxu0 0.0
    %84 = vmatpush1.msra.mxu0 %v62
    %85 = vmatprep.subr.mxu0 0.0
    %86 = vmatpush1.msra.mxu0 %v63
    %87 = vmatprep.subr.mxu0 0.0
    %88 = vmatpush1.msra.mxu0 %v64
    %89 = vmatprep.subr.mxu0 0.0
    %90 = vmatpush1.msra.mxu0 %v65
    %91 = vmatprep.subr.mxu0 0.0
    %92 = vmatpush1.msra.mxu0 0.0
    %93 = vmatprep.subr.mxu0 0.0
    %94 = vmatpush1.msra.mxu0 0.0
    %95 = vmatprep.subr.mxu0 0.0
    %96 = vmatpush1.msra.mxu0 0.0
    %97 = vmatprep.subr.mxu0 0.0
    %98 = vmatpush1.msra.mxu0 0.0
    %99 = vmatprep.subr.mxu0 0.0
    %100 = vmatpush1.msra.mxu0 0.0
    %101 = vmatprep.subr.mxu0 0.0
    %102 = vmatpush1.msra.mxu0 0.0
    %103 = vmatprep.subr.mxu0 0.0
    %104 = vmatpush1.msra.mxu0 0.0
    %105 = vmatprep.subr.mxu0 0.0
    %106 = vmatpush1.msra.mxu0 0.0
    %107 = vmatprep.subr.mxu0 0.0
    %108 = vmatpush1.msra.mxu0 0.0
    %109 = vmatprep.subr.mxu0 0.0
    %110 = vmatpush1.msra.mxu0 0.0
    %111 = vmatprep.subr.mxu0 0.0
    %112 = vmatpush1.msra.mxu0 0.0
    %113 = vmatprep.subr.mxu0 0.0
    %114 = vmatpush1.msra.mxu0 0.0
    %115 = vmatprep.subr.mxu0 0.0
    %116 = vmatpush1.msra.mxu0 0.0
    %117 = vmatprep.subr.mxu0 0.0
    %118 = vmatpush1.msra.mxu0 0.0
    %119 = vmatprep.subr.mxu0 0.0
    %120 = vmatpush1.msra.mxu0 0.0
    %121 = vmatprep.subr.mxu0 0.0
    %122 = vmatpush1.msra.mxu0 0.0
    %123 = vmatprep.subr.mxu0 0.0
    %124 = vmatpush1.msra.mxu0 0.0
    %125 = vmatprep.subr.mxu0 0.0
    %126 = vmatpush1.msra.mxu0 0.0
    %127 = vmatprep.subr.mxu0 0.0
    %128 = vmatpush1.msra.mxu0 0.0
    %129 = vmatprep.subr.mxu0 0.0
    %130 = vmatpush1.msra.mxu0 0.0
    %131 = vmatprep.subr.mxu0 0.0
    %132 = vmatpush1.msra.mxu0 0.0
    %133 = vmatprep.subr.mxu0 0.0
    %134 = vmatpush1.msra.mxu0 0.0
    %135 = vmatprep.subr.mxu0 0.0
    %136 = vmatpush1.msra.mxu0 0.0
    %137 = vmatprep.subr.mxu0 0.0
    %138 = vmatpush1.msra.mxu0 0.0
    %139 = vmatprep.subr.mxu0 0.0
    %140 = vmatpush1.msra.mxu0 0.0
    %141 = vmatprep.subr.mxu0 0.0
    %142 = vmatpush1.msra.mxu0 0.0
    %143 = vmatprep.subr.mxu0 0.0
    %144 = vmatpush1.msra.mxu0 0.0
    %145 = vmatprep.subr.mxu0 0.0
    %146 = vmatpush1.msra.mxu0 0.0
    %147 = vmatprep.mubr.f32.mxu0 0.0
    %148 = vmatmul.mubr.f32.gmra.mrb[0].mxu0 %v78
    %v149 = vpop.f32.mrb[0].mxu0
    %v150 = vadd.f32 %v69, %v149
    %v151 = vpop.f32.mrb[0].mxu0
    %152 = vmatprep.mubr.f32.mxu0 0.0
    %153 = vmatmul.mubr.f32.gmra.mrb[0].mxu0 %v81
    %v154 = vpop.f32.mrb[0].mxu0
    %v155 = vadd.f32 %v74, %v154
    %v156 = vpop.f32.mrb[0].mxu0
    %157 = vdwg.mxu0
    %v158 = vld [vmem:[%s1] sm:$0xff]
    %v159 = vld [vmem:[%s1 + $0x8] sm:$0xff]
    %v160 = vld [vmem:[%s1 + $0x10] sm:$0xff]
    %v161 = vld [vmem:[%s1 + $0x18] sm:$0xff]
    %163 = vset.pattern.permute.xlu0 0
    %164 = vperm.xlu0 %163, %v60
    %v165 = vpop.permute.xlu0 %164
    %168 = vset.pattern.permute.xlu0 0
    %169 = vperm.xlu0 %168, %v61
    %v170 = vpop.permute.xlu0 %169
    %v173 = vsel %vm76, %v50, 0
    %v176 = vsel %vm76, %v51, 0
    %178 = vmatprep.subr.mxu0 0.0
    %179 = vmatpush1.msra.mxu0 %v158
    %180 = vmatprep.subr.mxu0 0.0
    %181 = vmatpush1.msra.mxu0 %v159
    %182 = vmatprep.subr.mxu0 0.0
    %183 = vmatpush1.msra.mxu0 %v160
    %184 = vmatprep.subr.mxu0 0.0
    %185 = vmatpush1.msra.mxu0 %v161
    %186 = vmatprep.subr.mxu0 0.0
    %187 = vmatpush1.msra.mxu0 0.0
    %188 = vmatprep.subr.mxu0 0.0
    %189 = vmatpush1.msra.mxu0 0.0
    %190 = vmatprep.subr.mxu0 0.0
    %191 = vmatpush1.msra.mxu0 0.0
    %192 = vmatprep.subr.mxu0 0.0
    %193 = vmatpush1.msra.mxu0 0.0
    %194 = vmatprep.subr.mxu0 0.0
    %195 = vmatpush1.msra.mxu0 0.0
    %196 = vmatprep.subr.mxu0 0.0
    %197 = vmatpush1.msra.mxu0 0.0
    %198 = vmatprep.subr.mxu0 0.0
    %199 = vmatpush1.msra.mxu0 0.0
    %200 = vmatprep.subr.mxu0 0.0
    %201 = vmatpush1.msra.mxu0 0.0
    %202 = vmatprep.subr.mxu0 0.0
    %203 = vmatpush1.msra.mxu0 0.0
    %204 = vmatprep.subr.mxu0 0.0
    %205 = vmatpush1.msra.mxu0 0.0
    %206 = vmatprep.subr.mxu0 0.0
    %207 = vmatpush1.msra.mxu0 0.0
    %208 = vmatprep.subr.mxu0 0.0
    %209 = vmatpush1.msra.mxu0 0.0
    %210 = vmatprep.subr.mxu0 0.0
    %211 = vmatpush1.msra.mxu0 0.0
    %212 = vmatprep.subr.mxu0 0.0
    %213 = vmatpush1.msra.mxu0 0.0
    %214 = vmatprep.subr.mxu0 0.0
    %215 = vmatpush1.msra.mxu0 0.0
    %216 = vmatprep.subr.mxu0 0.0
    %217 = vmatpush1.msra.mxu0 0.0
    %218 = vmatprep.subr.mxu0 0.0
    %219 = vmatpush1.msra.mxu0 0.0
    %220 = vmatprep.subr.mxu0 0.0
    %221 = vmatpush1.msra.mxu0 0.0
    %222 = vmatprep.subr.mxu0 0.0
    %223 = vmatpush1.msra.mxu0 0.0
    %224 = vmatprep.subr.mxu0 0.0
    %225 = vmatpush1.msra.mxu0 0.0
    %226 = vmatprep.subr.mxu0 0.0
    %227 = vmatpush1.msra.mxu0 0.0
    %228 = vmatprep.subr.mxu0 0.0
    %229 = vmatpush1.msra.mxu0 0.0
    %230 = vmatprep.subr.mxu0 0.0
    %231 = vmatpush1.msra.mxu0 0.0
    %232 = vmatprep.subr.mxu0 0.0
    %233 = vmatpush1.msra.mxu0 0.0
    %234 = vmatprep.subr.mxu0 0.0
    %235 = vmatpush1.msra.mxu0 0.0
    %236 = vmatprep.subr.mxu0 0.0
    %237 = vmatpush1.msra.mxu0 0.0
    %238 = vmatprep.subr.mxu0 0.0
    %239 = vmatpush1.msra.mxu0 0.0
    %240 = vmatprep.subr.mxu0 0.0
    %241 = vmatpush1.msra.mxu0 0.0
    %242 = vmatprep.mubr.f32.mxu0 0.0
    %243 = vmatmul.mubr.f32.gmra.mrb[0].mxu0 %v173
    %v244 = vpop.f32.mrb[0].mxu0
    %v245 = vadd.f32 %v165, %v244
    %v246 = vpop.f32.mrb[0].mxu0
    %247 = vmatprep.mubr.f32.mxu0 0.0
    %248 = vmatmul.mubr.f32.gmra.mrb[0].mxu0 %v176
    %v249 = vpop.f32.mrb[0].mxu0
    %v250 = vadd.f32 %v170, %v249
    %v251 = vpop.f32.mrb[0].mxu0
    %252 = vdwg.mxu0
    %253 = vst [vmem:[%s11] sm:$0xff] %v150
    %254 = vst [vmem:[%s11 + $0x8] sm:$0xff] %v155
    %v255 = vmul.f32 %v150, %v150
    %v256 = vmul.f32 %v155, %v155
    %v257 = vadd.f32 %v255, %v256
    %v258 = vrot.slane %v257, 4
    %v259 = vadd.f32 %v257, %v258
    %v260 = vrot.slane %v259, 2
    %v261 = vadd.f32 %v259, %v260
    %v262 = vrot.slane %v261, 1
    %v263 = vadd.f32 %v261, %v262
    %v264 = vmax.f32 %v263, 1e-24
    %v265 = vrsqrt.pop %v264
    %v266 = vmul.f32 %v150, %v265
    %v267 = vmul.f32 %v155, %v265
    %v268 = vmul.f32 %v245, %v245
    %v269 = vmul.f32 %v250, %v250
    %v270 = vadd.f32 %v268, %v269
    %v271 = vrot.slane %v270, 4
    %v272 = vadd.f32 %v270, %v271
    %v273 = vrot.slane %v272, 2
    %v274 = vadd.f32 %v272, %v273
    %v275 = vrot.slane %v274, 1
    %v276 = vadd.f32 %v274, %v275
    %v277 = vmax.f32 %v276, 1e-24
    %v278 = vrsqrt.pop %v277
    %v279 = vmul.f32 %v245, %v278
    %v280 = vmul.f32 %v250, %v278
    %v281 = vsub.f32 %v266, %v279
    %v282 = vsub.f32 %v267, %v280
    %v283 = vmul.f32 %v281, %v281
    %v284 = vmul.f32 %v282, %v282
    %v285 = vadd.f32 %v283, %v284
    %286 = vadd.xlane.f32.xlu0 %v285
    %v287 = vpop.xlane.xlu0 %286
    %v288 = vrot.slane %v287, 4
    %v289 = vadd.f32 %v287, %v288
    %v290 = vrot.slane %v289, 2
    %v291 = vadd.f32 %v289, %v290
    %v292 = vrot.slane %v291, 1
    %v293 = vadd.f32 %v291, %v292
    %s294 = vtos %v293
    %s295 = smul.f32 %s294, 0.00048828125
    %v296 = vld [vmem:[%s6] sm:$0xff]
    %v297 = vld [vmem:[%s6 + $0x8] sm:$0xff]
    %v298 = vld [vmem:[%s6 + $0x10] sm:$0xff]
    %v299 = vld [vmem:[%s6 + $0x18] sm:$0xff]
    %v300 = vld [vmem:[%s7] sm:$0xff]
    %v301 = vld [vmem:[%s7 + $0x8] sm:$0xff]
    %v302 = vld [vmem:[%s7 + $0x10] sm:$0xff]
    %v303 = vld [vmem:[%s7 + $0x18] sm:$0xff]
    %305 = vset.pattern.permute.xlu0 0
    %306 = vperm.xlu0 %305, %v300
    %v307 = vpop.permute.xlu0 %306
    %310 = vset.pattern.permute.xlu0 0
    %311 = vperm.xlu0 %310, %v301
    %v312 = vpop.permute.xlu0 %311
    %315 = vset.pattern.permute.xlu0 0
    %316 = vperm.xlu0 %315, %v302
    %v317 = vpop.permute.xlu0 %316
    %320 = vset.pattern.permute.xlu0 0
    %321 = vperm.xlu0 %320, %v303
    %v322 = vpop.permute.xlu0 %321
    %vm324 = vcmask 130048
    %v326 = vsel %vm324, %v296, 0
    %v329 = vsel %vm324, %v297, 0
    %v332 = vsel %vm324, %v298, 0
    %v335 = vsel %vm324, %v299, 0
    %337 = vmatprep.subr.mxu0 0.0
    %338 = vmatpush1.msra.mxu0 %v245
    %339 = vmatprep.subr.mxu0 0.0
    %340 = vmatpush1.msra.mxu0 %v250
    %341 = vmatprep.subr.mxu0 0.0
    %342 = vmatpush1.msra.mxu0 0.0
    %343 = vmatprep.subr.mxu0 0.0
    %344 = vmatpush1.msra.mxu0 0.0
    %345 = vmatprep.subr.mxu0 0.0
    %346 = vmatpush1.msra.mxu0 0.0
    %347 = vmatprep.subr.mxu0 0.0
    %348 = vmatpush1.msra.mxu0 0.0
    %349 = vmatprep.subr.mxu0 0.0
    %350 = vmatpush1.msra.mxu0 0.0
    %351 = vmatprep.subr.mxu0 0.0
    %352 = vmatpush1.msra.mxu0 0.0
    %353 = vmatprep.subr.mxu0 0.0
    %354 = vmatpush1.msra.mxu0 0.0
    %355 = vmatprep.subr.mxu0 0.0
    %356 = vmatpush1.msra.mxu0 0.0
    %357 = vmatprep.subr.mxu0 0.0
    %358 = vmatpush1.msra.mxu0 0.0
    %359 = vmatprep.subr.mxu0 0.0
    %360 = vmatpush1.msra.mxu0 0.0
    %361 = vmatprep.subr.mxu0 0.0
    %362 = vmatpush1.msra.mxu0 0.0
    %363 = vmatprep.subr.mxu0 0.0
    %364 = vmatpush1.msra.mxu0 0.0
    %365 = vmatprep.subr.mxu0 0.0
    %366 = vmatpush1.msra.mxu0 0.0
    %367 = vmatprep.subr.mxu0 0.0
    %368 = vmatpush1.msra.mxu0 0.0
    %369 = vmatprep.subr.mxu0 0.0
    %370 = vmatpush1.msra.mxu0 0.0
    %371 = vmatprep.subr.mxu0 0.0
    %372 = vmatpush1.msra.mxu0 0.0
    %373 = vmatprep.subr.mxu0 0.0
    %374 = vmatpush1.msra.mxu0 0.0
    %375 = vmatprep.subr.mxu0 0.0
    %376 = vmatpush1.msra.mxu0 0.0
    %377 = vmatprep.subr.mxu0 0.0
    %378 = vmatpush1.msra.mxu0 0.0
    %379 = vmatprep.subr.mxu0 0.0
    %380 = vmatpush1.msra.mxu0 0.0
    %381 = vmatprep.subr.mxu0 0.0
    %382 = vmatpush1.msra.mxu0 0.0
    %383 = vmatprep.subr.mxu0 0.0
    %384 = vmatpush1.msra.mxu0 0.0
    %385 = vmatprep.subr.mxu0 0.0
    %386 = vmatpush1.msra.mxu0 0.0
    %387 = vmatprep.subr.mxu0 0.0
    %388 = vmatpush1.msra.mxu0 0.0
    %389 = vmatprep.subr.mxu0 0.0
    %390 = vmatpush1.msra.mxu0 0.0
    %391 = vmatprep.subr.mxu0 0.0
    %392 = vmatpush1.msra.mxu0 0.0
    %393 = vmatprep.subr.mxu0 0.0
    %394 = vmatpush1.msra.mxu0 0.0
    %395 = vmatprep.subr.mxu0 0.0
    %396 = vmatpush1.msra.mxu0 0.0
    %397 = vmatprep.subr.mxu0 0.0
    %398 = vmatpush1.msra.mxu0 0.0
    %399 = vmatprep.subr.mxu0 0.0
    %400 = vmatpush1.msra.mxu0 0.0
    %401 = vmatprep.mubr.f32.mxu0 0.0
    %402 = vmatmul.mubr.f32.gmra.mrb[0].mxu0 %v326
    %v403 = vpop.f32.mrb[0].mxu0
    %v404 = vadd.f32 %v307, %v403
    %v405 = vpop.f32.mrb[0].mxu0
    %406 = vmatprep.mubr.f32.mxu0 0.0
    %407 = vmatmul.mubr.f32.gmra.mrb[0].mxu0 %v329
    %v408 = vpop.f32.mrb[0].mxu0
    %v409 = vadd.f32 %v312, %v408
    %v410 = vpop.f32.mrb[0].mxu0
    %411 = vmatprep.mubr.f32.mxu0 0.0
    %412 = vmatmul.mubr.f32.gmra.mrb[0].mxu0 %v332
    %v413 = vpop.f32.mrb[0].mxu0
    %v414 = vadd.f32 %v317, %v413
    %v415 = vpop.f32.mrb[0].mxu0
    %416 = vmatprep.mubr.f32.mxu0 0.0
    %417 = vmatmul.mubr.f32.gmra.mrb[0].mxu0 %v335
    %v418 = vpop.f32.mrb[0].mxu0
    %v419 = vadd.f32 %v322, %v418
    %v420 = vpop.f32.mrb[0].mxu0
    %421 = vdwg.mxu0
    %v422 = vlaneseq
    %v423 = vshrl.u32 %v422, 7
    %v424 = vadd.s32 %v423, 8
    %v425 = vadd.s32 %v423, 16
    %v426 = vadd.s32 %v423, 24
    %v427 = vmin.f32 %v404, %v409
    %v428 = vrot.slane %v427, 4
    %v429 = vmin.f32 %v427, %v428
    %v430 = vrot.slane %v429, 2
    %v431 = vmin.f32 %v429, %v430
    %v432 = vrot.slane %v431, 1
    %v433 = vmin.f32 %v431, %v432
    %v434 = vmin.f32 %v414, %v419
    %v435 = vrot.slane %v434, 4
    %v436 = vmin.f32 %v434, %v435
    %v437 = vrot.slane %v436, 2
    %v438 = vmin.f32 %v436, %v437
    %v439 = vrot.slane %v438, 1
    %v440 = vmin.f32 %v438, %v439
    %vm441 = vcmp.lt.s32.totalorder %v423, 16
    %vm442 = vcmp.lt.s32.totalorder %v424, 16
    %vm443 = vcmp.lt.s32.totalorder %v425, 16
    %vm444 = vcmp.lt.s32.totalorder %v426, 16
    %v445 = vsel %vm441, %v433, %v440
    %v446 = vsel %vm442, %v433, %v440
    %v447 = vsel %vm443, %v433, %v440
    %v448 = vsel %vm444, %v433, %v440
    %vm449 = vcmp.le.f32.partialorder %v404, %v445
    %vm450 = vcmp.le.f32.partialorder %v409, %v446
    %vm451 = vcmp.le.f32.partialorder %v414, %v447
    %vm452 = vcmp.le.f32.partialorder %v419, %v448
    %v453 = vsel %vm449, %v423, 32
    %v454 = vsel %vm450, %v424, 32
    %v455 = vsel %vm451, %v425, 32
    %v456 = vsel %vm452, %v426, 32
    %vm457 = vcmp.lt.s32.totalorder %v453, %v454
    %v458 = vsel %vm457, %v453, %v454
    %v459 = vrot.slane %v458, 4
    %vm460 = vcmp.lt.s32.totalorder %v458, %v459
    %v461 = vsel %vm460, %v458, %v459
    %v462 = vrot.slane %v461, 2
    %vm463 = vcmp.lt.s32.totalorder %v461, %v462
    %v464 = vsel %vm463, %v461, %v462
    %v465 = vrot.slane %v464, 1
    %vm466 = vcmp.lt.s32.totalorder %v464, %v465
    %v467 = vsel %vm466, %v464, %v465
    %vm468 = vcmp.lt.s32.totalorder %v455, %v456
    %v469 = vsel %vm468, %v455, %v456
    %v470 = vrot.slane %v469, 4
    %vm471 = vcmp.lt.s32.totalorder %v469, %v470
    %v472 = vsel %vm471, %v469, %v470
    %v473 = vrot.slane %v472, 2
    %vm474 = vcmp.lt.s32.totalorder %v472, %v473
    %v475 = vsel %vm474, %v472, %v473
    %v476 = vrot.slane %v475, 1
    %vm477 = vcmp.lt.s32.totalorder %v475, %v476
    %v478 = vsel %vm477, %v475, %v476
    %v479 = vsel %vm441, %v467, %v478
    %v480 = vsel %vm442, %v467, %v478
    %v481 = vsel %vm443, %v467, %v478
    %v482 = vsel %vm444, %v467, %v478
    %vm483 = vcmp.eq.s32.totalorder %v423, %v479
    %vm484 = vcmp.eq.s32.totalorder %v424, %v480
    %vm485 = vcmp.eq.s32.totalorder %v425, %v481
    %vm486 = vcmp.eq.s32.totalorder %v426, %v482
    %v487 = vsel %vm483, 1, 0
    %v488 = vsel %vm484, 1, 0
    %v489 = vsel %vm485, 1, 0
    %v490 = vsel %vm486, 1, 0
    %v491 = vcvt.s32.f32 %v487
    %v492 = vcvt.s32.f32 %v488
    %v493 = vcvt.s32.f32 %v489
    %v494 = vcvt.s32.f32 %v490
    %v495 = vld [vmem:[%s8] sm:$0xff]
    %v496 = vld [vmem:[%s8 + $0x8] sm:$0xff]
    %v498 = vsel %vm76, %v495, 0
    %v501 = vsel %vm76, %v496, 0
    %503 = vmatprep.subr.mxu0 0.0
    %504 = vmatpush1.msra.mxu0 %v491
    %505 = vmatprep.subr.mxu0 0.0
    %506 = vmatpush1.msra.mxu0 %v492
    %507 = vmatprep.subr.mxu0 0.0
    %508 = vmatpush1.msra.mxu0 %v493
    %509 = vmatprep.subr.mxu0 0.0
    %510 = vmatpush1.msra.mxu0 %v494
    %511 = vmatprep.subr.mxu0 0.0
    %512 = vmatpush1.msra.mxu0 0.0
    %513 = vmatprep.subr.mxu0 0.0
    %514 = vmatpush1.msra.mxu0 0.0
    %515 = vmatprep.subr.mxu0 0.0
    %516 = vmatpush1.msra.mxu0 0.0
    %517 = vmatprep.subr.mxu0 0.0
    %518 = vmatpush1.msra.mxu0 0.0
    %519 = vmatprep.subr.mxu0 0.0
    %520 = vmatpush1.msra.mxu0 0.0
    %521 = vmatprep.subr.mxu0 0.0
    %522 = vmatpush1.msra.mxu0 0.0
    %523 = vmatprep.subr.mxu0 0.0
    %524 = vmatpush1.msra.mxu0 0.0
    %525 = vmatprep.subr.mxu0 0.0
    %526 = vmatpush1.msra.mxu0 0.0
    %527 = vmatprep.subr.mxu0 0.0
    %528 = vmatpush1.msra.mxu0 0.0
    %529 = vmatprep.subr.mxu0 0.0
    %530 = vmatpush1.msra.mxu0 0.0
    %531 = vmatprep.subr.mxu0 0.0
    %532 = vmatpush1.msra.mxu0 0.0
    %533 = vmatprep.subr.mxu0 0.0
    %534 = vmatpush1.msra.mxu0 0.0
    %535 = vmatprep.subr.mxu0 0.0
    %536 = vmatpush1.msra.mxu0 0.0
    %537 = vmatprep.subr.mxu0 0.0
    %538 = vmatpush1.msra.mxu0 0.0
    %539 = vmatprep.subr.mxu0 0.0
    %540 = vmatpush1.msra.mxu0 0.0
    %541 = vmatprep.subr.mxu0 0.0
    %542 = vmatpush1.msra.mxu0 0.0
    %543 = vmatprep.subr.mxu0 0.0
    %544 = vmatpush1.msra.mxu0 0.0
    %545 = vmatprep.subr.mxu0 0.0
    %546 = vmatpush1.msra.mxu0 0.0
    %547 = vmatprep.subr.mxu0 0.0
    %548 = vmatpush1.msra.mxu0 0.0
    %549 = vmatprep.subr.mxu0 0.0
    %550 = vmatpush1.msra.mxu0 0.0
    %551 = vmatprep.subr.mxu0 0.0
    %552 = vmatpush1.msra.mxu0 0.0
    %553 = vmatprep.subr.mxu0 0.0
    %554 = vmatpush1.msra.mxu0 0.0
    %555 = vmatprep.subr.mxu0 0.0
    %556 = vmatpush1.msra.mxu0 0.0
    %557 = vmatprep.subr.mxu0 0.0
    %558 = vmatpush1.msra.mxu0 0.0
    %559 = vmatprep.subr.mxu0 0.0
    %560 = vmatpush1.msra.mxu0 0.0
    %561 = vmatprep.subr.mxu0 0.0
    %562 = vmatpush1.msra.mxu0 0.0
    %563 = vmatprep.subr.mxu0 0.0
    %564 = vmatpush1.msra.mxu0 0.0
    %565 = vmatprep.subr.mxu0 0.0
    %566 = vmatpush1.msra.mxu0 0.0
    %567 = vmatprep.mubr.f32.mxu0 0.0
    %568 = vmatmul.mubr.f32.gmra.mrb[0].mxu0 %v498
    %v569 = vpop.f32.mrb[0].mxu0
    %v570 = vadd.f32 0.0, %v569
    %v571 = vpop.f32.mrb[0].mxu0
    %572 = vmatprep.mubr.f32.mxu0 0.0
    %573 = vmatmul.mubr.f32.gmra.mrb[0].mxu0 %v501
    %v574 = vpop.f32.mrb[0].mxu0
    %v575 = vadd.f32 0.0, %v574
    %v576 = vpop.f32.mrb[0].mxu0
    %577 = vdwg.mxu0
    %578 = vst [vmem:[%s12] sm:$0xff] %v570
    %579 = vst [vmem:[%s12 + $0x8] sm:$0xff] %v575
    %v580 = vsub.f32 %v570, %v245
    %v581 = vsub.f32 %v575, %v250
    %v582 = vmul.f32 %v580, %v580
    %v583 = vmul.f32 %v581, %v581
    %v584 = vadd.f32 %v582, %v583
    %585 = vadd.xlane.f32.xlu0 %v584
    %v586 = vpop.xlane.xlu0 %585
    %v587 = vrot.slane %v586, 4
    %v588 = vadd.f32 %v586, %v587
    %v589 = vrot.slane %v588, 2
    %v590 = vadd.f32 %v588, %v589
    %v591 = vrot.slane %v590, 1
    %v592 = vadd.f32 %v590, %v591
    %s593 = vtos %v592
    %s594 = smul.f32 %s593, 1.25
    %s595 = smul.f32 %s594, 0.00048828125
    %v596 = vld [vmem:[%s9] sm:$0xff]
    %v597 = vld [vmem:[%s9 + $0x8] sm:$0xff]
    %v598 = vld [vmem:[%s9 + $0x10] sm:$0xff]
    %v599 = vld [vmem:[%s9 + $0x18] sm:$0xff]
    %v600 = vld [vmem:[%s10] sm:$0xff]
    %v601 = vld [vmem:[%s10 + $0x8] sm:$0xff]
    %v602 = vld [vmem:[%s10 + $0x10] sm:$0xff]
    %v603 = vld [vmem:[%s10 + $0x18] sm:$0xff]
    %605 = vset.pattern.permute.xlu0 0
    %606 = vperm.xlu0 %605, %v600
    %v607 = vpop.permute.xlu0 %606
    %610 = vset.pattern.permute.xlu0 0
    %611 = vperm.xlu0 %610, %v601
    %v612 = vpop.permute.xlu0 %611
    %615 = vset.pattern.permute.xlu0 0
    %616 = vperm.xlu0 %615, %v602
    %v617 = vpop.permute.xlu0 %616
    %620 = vset.pattern.permute.xlu0 0
    %621 = vperm.xlu0 %620, %v603
    %v622 = vpop.permute.xlu0 %621
    %v625 = vsel %vm324, %v596, 0
    %v628 = vsel %vm324, %v597, 0
    %v631 = vsel %vm324, %v598, 0
    %v634 = vsel %vm324, %v599, 0
    %636 = vmatprep.subr.mxu0 0.0
    %637 = vmatpush1.msra.mxu0 %v150
    %638 = vmatprep.subr.mxu0 0.0
    %639 = vmatpush1.msra.mxu0 %v155
    %640 = vmatprep.subr.mxu0 0.0
    %641 = vmatpush1.msra.mxu0 0.0
    %642 = vmatprep.subr.mxu0 0.0
    %643 = vmatpush1.msra.mxu0 0.0
    %644 = vmatprep.subr.mxu0 0.0
    %645 = vmatpush1.msra.mxu0 0.0
    %646 = vmatprep.subr.mxu0 0.0
    %647 = vmatpush1.msra.mxu0 0.0
    %648 = vmatprep.subr.mxu0 0.0
    %649 = vmatpush1.msra.mxu0 0.0
    %650 = vmatprep.subr.mxu0 0.0
    %651 = vmatpush1.msra.mxu0 0.0
    %652 = vmatprep.subr.mxu0 0.0
    %653 = vmatpush1.msra.mxu0 0.0
    %654 = vmatprep.subr.mxu0 0.0
    %655 = vmatpush1.msra.mxu0 0.0
    %656 = vmatprep.subr.mxu0 0.0
    %657 = vmatpush1.msra.mxu0 0.0
    %658 = vmatprep.subr.mxu0 0.0
    %659 = vmatpush1.msra.mxu0 0.0
    %660 = vmatprep.subr.mxu0 0.0
    %661 = vmatpush1.msra.mxu0 0.0
    %662 = vmatprep.subr.mxu0 0.0
    %663 = vmatpush1.msra.mxu0 0.0
    %664 = vmatprep.subr.mxu0 0.0
    %665 = vmatpush1.msra.mxu0 0.0
    %666 = vmatprep.subr.mxu0 0.0
    %667 = vmatpush1.msra.mxu0 0.0
    %668 = vmatprep.subr.mxu0 0.0
    %669 = vmatpush1.msra.mxu0 0.0
    %670 = vmatprep.subr.mxu0 0.0
    %671 = vmatpush1.msra.mxu0 0.0
    %672 = vmatprep.subr.mxu0 0.0
    %673 = vmatpush1.msra.mxu0 0.0
    %674 = vmatprep.subr.mxu0 0.0
    %675 = vmatpush1.msra.mxu0 0.0
    %676 = vmatprep.subr.mxu0 0.0
    %677 = vmatpush1.msra.mxu0 0.0
    %678 = vmatprep.subr.mxu0 0.0
    %679 = vmatpush1.msra.mxu0 0.0
    %680 = vmatprep.subr.mxu0 0.0
    %681 = vmatpush1.msra.mxu0 0.0
    %682 = vmatprep.subr.mxu0 0.0
    %683 = vmatpush1.msra.mxu0 0.0
    %684 = vmatprep.subr.mxu0 0.0
    %685 = vmatpush1.msra.mxu0 0.0
    %686 = vmatprep.subr.mxu0 0.0
    %687 = vmatpush1.msra.mxu0 0.0
    %688 = vmatprep.subr.mxu0 0.0
    %689 = vmatpush1.msra.mxu0 0.0
    %690 = vmatprep.subr.mxu0 0.0
    %691 = vmatpush1.msra.mxu0 0.0
    %692 = vmatprep.subr.mxu0 0.0
    %693 = vmatpush1.msra.mxu0 0.0
    %694 = vmatprep.subr.mxu0 0.0
    %695 = vmatpush1.msra.mxu0 0.0
    %696 = vmatprep.subr.mxu0 0.0
    %697 = vmatpush1.msra.mxu0 0.0
    %698 = vmatprep.subr.mxu0 0.0
    %699 = vmatpush1.msra.mxu0 0.0
    %700 = vmatprep.mubr.f32.mxu0 0.0
    %701 = vmatmul.mubr.f32.gmra.mrb[0].mxu0 %v625
    %v702 = vpop.f32.mrb[0].mxu0
    %v703 = vadd.f32 %v607, %v702
    %v704 = vpop.f32.mrb[0].mxu0
    %705 = vmatprep.mubr.f32.mxu0 0.0
    %706 = vmatmul.mubr.f32.gmra.mrb[0].mxu0 %v628
    %v707 = vpop.f32.mrb[0].mxu0
    %v708 = vadd.f32 %v612, %v707
    %v709 = vpop.f32.mrb[0].mxu0
    %710 = vmatprep.mubr.f32.mxu0 0.0
    %711 = vmatmul.mubr.f32.gmra.mrb[0].mxu0 %v631
    %v712 = vpop.f32.mrb[0].mxu0
    %v713 = vadd.f32 %v617, %v712
    %v714 = vpop.f32.mrb[0].mxu0
    %715 = vmatprep.mubr.f32.mxu0 0.0
    %716 = vmatmul.mubr.f32.gmra.mrb[0].mxu0 %v634
    %v717 = vpop.f32.mrb[0].mxu0
    %v718 = vadd.f32 %v622, %v717
    %v719 = vpop.f32.mrb[0].mxu0
    %720 = vdwg.mxu0
    %v721 = vmax.f32 %v703, %v708
    %v722 = vrot.slane %v721, 4
    %v723 = vmax.f32 %v721, %v722
    %v724 = vrot.slane %v723, 2
    %v725 = vmax.f32 %v723, %v724
    %v726 = vrot.slane %v725, 1
    %v727 = vmax.f32 %v725, %v726
    %v728 = vsub.f32 %v703, %v727
    %v729 = vsub.f32 %v708, %v727
    %v730 = vmul.f32 %v728, 1.442695
    %v731 = vpow.pop %v730
    %v732 = vmul.f32 %v729, 1.442695
    %v733 = vpow.pop %v732
    %v734 = vadd.f32 %v731, %v733
    %v735 = vrot.slane %v734, 4
    %v736 = vadd.f32 %v734, %v735
    %v737 = vrot.slane %v736, 2
    %v738 = vadd.f32 %v736, %v737
    %v739 = vrot.slane %v738, 1
    %v740 = vadd.f32 %v738, %v739
    %v741 = vlog2.pop %v740
    %v742 = vmul.f32 %v741, 0.6931472
    %v743 = vadd.f32 %v742, %v727
    %vm744 = vcmask 1040384
    %v745 = vsel %vm744, %v743, 0.0
    %746 = vadd.xlane.f32.xlu0 %v745
    %v747 = vpop.xlane.xlu0 %746
    %v748 = vrot.slane %v747, 4
    %v749 = vadd.f32 %v747, %v748
    %v750 = vrot.slane %v749, 2
    %v751 = vadd.f32 %v749, %v750
    %v752 = vrot.slane %v751, 1
    %v753 = vadd.f32 %v751, %v752
    %s754 = vtos %v753
    %s755 = sadd.f32 %s754, 0.0
    %v756 = vmax.f32 %v713, %v718
    %v757 = vrot.slane %v756, 4
    %v758 = vmax.f32 %v756, %v757
    %v759 = vrot.slane %v758, 2
    %v760 = vmax.f32 %v758, %v759
    %v761 = vrot.slane %v760, 1
    %v762 = vmax.f32 %v760, %v761
    %v763 = vsub.f32 %v713, %v762
    %v764 = vsub.f32 %v718, %v762
    %v765 = vmul.f32 %v763, 1.442695
    %v766 = vpow.pop %v765
    %v767 = vmul.f32 %v764, 1.442695
    %v768 = vpow.pop %v767
    %v769 = vadd.f32 %v766, %v768
    %v770 = vrot.slane %v769, 4
    %v771 = vadd.f32 %v769, %v770
    %v772 = vrot.slane %v771, 2
    %v773 = vadd.f32 %v771, %v772
    %v774 = vrot.slane %v773, 1
    %v775 = vadd.f32 %v773, %v774
    %v776 = vlog2.pop %v775
    %v777 = vmul.f32 %v776, 0.6931472
    %v778 = vadd.f32 %v777, %v762
    %v779 = vsel %vm744, %v778, 0.0
    %780 = vadd.xlane.f32.xlu0 %v779
    %v781 = vpop.xlane.xlu0 %780
    %v782 = vrot.slane %v781, 4
    %v783 = vadd.f32 %v781, %v782
    %v784 = vrot.slane %v783, 2
    %v785 = vadd.f32 %v783, %v784
    %v786 = vrot.slane %v785, 1
    %v787 = vadd.f32 %v785, %v786
    %s788 = vtos %v787
    %s789 = sadd.f32 %s755, %s788
    %v790 = vmul.f32 %v491, %v703
    %v791 = vmul.f32 %v492, %v708
    %v792 = vmul.f32 %v493, %v713
    %v793 = vmul.f32 %v494, %v718
    %v794 = vadd.f32 %v790, %v791
    %v795 = vadd.f32 %v794, %v792
    %v796 = vadd.f32 %v795, %v793
    %797 = vadd.xlane.f32.xlu0 %v796
    %v798 = vpop.xlane.xlu0 %797
    %v799 = vrot.slane %v798, 4
    %v800 = vadd.f32 %v798, %v799
    %v801 = vrot.slane %v800, 2
    %v802 = vadd.f32 %v800, %v801
    %v803 = vrot.slane %v802, 1
    %v804 = vadd.f32 %v802, %v803
    %s805 = vtos %v804
    %s806 = ssub.f32 %s789, %s805
    %s807 = smul.f32 %s806, 0.00390625
    %s808 = scalar_lea.smem [#allocation2], 0
    %809 = sst [smem:[%s808]] %s595
    %s810 = scalar_lea.smem [#allocation2], 1
    %811 = sst [smem:[%s810]] %s295
    %s812 = scalar_lea.smem [#allocation2], 2
    %813 = sst [smem:[%s812]] %s807
    // Predicated region
    $region46: #{dino_pqgo_cls_forward.1} parent=1 // pred_check
      _
    $region47: #{dino_pqgo_cls_forward.1} parent=1 // pred_check_branch
      %815 = sbr.rel (0) target = $region49
    $region48: #{dino_pqgo_cls_forward.1} parent=1 // pred_region
      _
    $region49: #{dino_pqgo_cls_forward.1} parent=1 // pred_fallthru
      _
    // Predicated region
    $region50: #{dino_pqgo_cls_forward.1} parent=1 // pred_check
      _
    $region51: #{dino_pqgo_cls_forward.1} parent=1 // pred_check_branch
      %817 = sbr.rel (0) target = $region53
    $region52: #{dino_pqgo_cls_forward.1} parent=1 // pred_region
      _
    $region53: #{dino_pqgo_cls_forward.1} parent=1 // pred_fallthru
      _
    // Predicated region
    $region54: #{dino_pqgo_cls_forward.1} parent=1 // pred_check
      _
    $region55: #{dino_pqgo_cls_forward.1} parent=1 // pred_check_branch
      %819 = sbr.rel (0) target = $region57
    $region56: #{dino_pqgo_cls_forward.1} parent=1 // pred_region
      %s821 = ssub.s32 16, 16
      %822 = vsyncadd [#allocation3], %s821
      %s824 = sshll.u32 %s13, 4
      %s825 = int_to_ptr.vmem [resolvable:$true] %s824
      %827 = dma.smem_to_vmem [#allocation2], 16, %s825, [#allocation3]
    $region57: #{dino_pqgo_cls_forward.1} parent=1 // pred_fallthru
      _
    // Predicated region
    $region58: #{dino_pqgo_cls_forward.1} parent=1 // pred_check
      _
    $region59: #{dino_pqgo_cls_forward.1} parent=1 // pred_check_branch
      %829 = sbr.rel (0) target = $region61
    $region60: #{dino_pqgo_cls_forward.1} parent=1 // pred_region
      _
    $region61: #{dino_pqgo_cls_forward.1} parent=1 // pred_fallthru
      _
    // Predicated region
    $region62: #{dino_pqgo_cls_forward.1} parent=1 // pred_check
      _
    $region63: #{dino_pqgo_cls_forward.1} parent=1 // pred_check_branch
      %831 = sbr.rel (0) target = $region65
    $region64: #{dino_pqgo_cls_forward.1} parent=1 // pred_region
      _
    $region65: #{dino_pqgo_cls_forward.1} parent=1 // pred_fallthru
      _
    // Predicated region
    $region66: #{dino_pqgo_cls_forward.1} parent=1 // pred_check
      _
    $region67: #{dino_pqgo_cls_forward.1} parent=1 // pred_check_branch
      %833 = sbr.rel (0) target = $region69
    $region68: #{dino_pqgo_cls_forward.1} parent=1 // pred_region
      %834 = dma.done [#allocation3], 16
    $region69: #{dino_pqgo_cls_forward.1} parent=1 // pred_fallthru
      _
    %835 = sfence
    %836 = vsyncpa [#allocation3], 1

</llo_original>
